<compile_context>
chip_gen: v5e
topology: v5e:2x2
jax: 0.10.0
libtpu: 0.0.40
codegen_flags: <defaults>
</compile_context>

<pallas_src>
import jax
import jax.numpy as jnp
from jax.experimental import pallas as pl
from jax.experimental.pallas import tpu as pltpu


# ---------------------------------------------------------------------------
# model hyper-parameters (small, consistent with the module)
# ---------------------------------------------------------------------------
B = 8            # batch (>1 so training-mode BatchNorm is well defined; fills sublanes)
SEQ_LEN = 8
FEAT_DIM = 4
HIDDEN = 32
LATENT = 32
Z_DIM = 8
TREND_POLY = 2

D_IN = SEQ_LEN * FEAT_DIM          # 32
FP = FEAT_DIM * TREND_POLY         # 8
BN_EPS = 1e-5
LEAK = 0.2

PAD_W = 32                         # lane width of the parameter slab
OUT_W = D_IN + 2 * Z_DIM           # 48 = xhat(32) | mean(8) | var(8)

# parameter-slab row offsets (all multiples of 8 -> tile-aligned static slices)
R_EW1 = 0            # (32, 32)
R_EW2 = 32           # (32, 32)
R_MVW = 64           # (32, 32): cols 0:8 = mean W, 8:16 = var W, rest 0
R_DW1 = 96           # ( 8, 32)
R_DW2 = 104          # (32, 32)
R_WCAT = 136         # (64, 32): rows 0:32 = dw3, 32:40 = tw2@M, rest 0
R_TW1 = 200          # ( 8, 32): cols 0:8 = tw1, rest 0
R_VEC = 208          # (16, 32): bias / gamma / beta row vectors
SLAB_ROWS = 224


def _leaky_relu(x):
    return jnp.where(x > 0, x, LEAK * x)


def _batchnorm_train(x, gamma, beta):
    # nn.BatchNorm1d training mode: batch mean, biased batch variance.
    mu = jnp.mean(x, axis=0, keepdims=True)
    var = jnp.mean((x - mu) ** 2, axis=0, keepdims=True)
    return (x - mu) * jax.lax.rsqrt(var + BN_EPS) * gamma + beta


def _bn_lrelu(x, gamma, beta):
    return _leaky_relu(_batchnorm_train(x, gamma, beta))


# ---------------------------------------------------------------------------
# Pallas kernel: full Trend_Vae forward (3 inputs, 1 lane-packed output)
# ---------------------------------------------------------------------------
def trend_vae_kernel(x_ref, eps_ref, w_ref, out_ref):
    f32 = jnp.float32
    x = x_ref[...]                    # (B, 32)
    eps = eps_ref[...]                # (B, 8)
    v = w_ref[R_VEC:R_VEC + 16, :]    # (16, 32) bias/gamma/beta block, loaded once

    # hoisted (1,32) row vectors — each bound exactly once
    eb1, g1, b1 = v[0:1], v[1:2], v[2:3]
    eb2, g2, b2 = v[3:4], v[4:5], v[5:6]
    mvb = v[6:7]
    db1, g3, b3 = v[7:8], v[8:9], v[9:10]
    db2, g4, b4 = v[10:11], v[11:12], v[12:13]
    bcat = v[13:14]
    tb1 = v[14:15]

    # ---- encoder ----
    h = jnp.dot(x, w_ref[R_EW1:R_EW1 + D_IN, :], preferred_element_type=f32) + eb1
    h = _bn_lrelu(h, g1, b1)
    h = jnp.dot(h, w_ref[R_EW2:R_EW2 + HIDDEN, :], preferred_element_type=f32) + eb2
    h = _bn_lrelu(h, g2, b2)

    # ---- fused mean/var heads: cols 0:8 = mean, 8:16 = var ----
    mv = jnp.dot(h, w_ref[R_MVW:R_MVW + LATENT, :], preferred_element_type=f32) + mvb
    mean = mv[:, 0:Z_DIM]
    var = mv[:, Z_DIM:2 * Z_DIM]

    # ---- reparameterization: z = mean + var * eps ----
    z = mean + var * eps              # (B, 8)

    # ---- decoder ----
    d = jnp.dot(z, w_ref[R_DW1:R_DW1 + Z_DIM, :], preferred_element_type=f32) + db1
    d = _bn_lrelu(d, g3, b3)
    d = jnp.dot(d, w_ref[R_DW2:R_DW2 + LATENT, :], preferred_element_type=f32) + db2
    d = _bn_lrelu(d, g4, b4)          # (B, 32)

    # ---- trend hidden: padded cols (8:32) stay exactly 0 (zero W, zero b, relu) ----
    tp = jnp.maximum(
        jnp.dot(z, w_ref[R_TW1:R_TW1 + Z_DIM, :], preferred_element_type=f32) + tb1,
        0.0,
    )                                  # (B, 32)

    # ---- fused decoder-output + trend projection ----
    # [d | tp] (B,64) @ [dw3 ; tw2@M ; 0] (64,32) + (db3 + tb2@M)
    dt = jnp.concatenate([d, tp], axis=-1)
    xhat = jnp.dot(dt, w_ref[R_WCAT:R_WCAT + 64, :], preferred_element_type=f32) + bcat

    # ---- single lane-packed output ----
    out_ref[...] = jnp.concatenate([xhat, mean, var], axis=-1)   # (B, 48)


# ---------------------------------------------------------------------------
# wrapper
# ---------------------------------------------------------------------------
@jax.jit
def trend_vae_forward(x, eps, slab):
    x_flat = x.reshape(x.shape[0], -1)
    vmem = pl.BlockSpec(memory_space=pltpu.MemorySpace.VMEM)

    out = pl.pallas_call(
        trend_vae_kernel,
        out_shape=jax.ShapeDtypeStruct((B, OUT_W), jnp.float32),
        in_specs=[vmem, vmem, vmem],
        out_specs=vmem,
        cost_estimate=pl.CostEstimate(
            flops=110_000, transcendentals=128, bytes_accessed=32_768
        ),
    )(x_flat, eps, slab)

    x_hat = out[:, :D_IN].reshape(B, SEQ_LEN, FEAT_DIM)
    mean = out[:, D_IN:D_IN + Z_DIM]
    var = out[:, D_IN + Z_DIM:]
    return x_hat, mean, var


# ---------------------------------------------------------------------------
# deterministic parameter construction (raw, PyTorch-like layout transposed)
# ---------------------------------------------------------------------------
def make_params(key):
    keys = iter(jax.random.split(key, 32))

    def lin(d_in, d_out):
        # stored already transposed: (in, out); bias as (1, out)
        w = jax.random.normal(next(keys), (d_in, d_out), jnp.float32) * 0.1
        b = jax.random.normal(next(keys), (1, d_out), jnp.float32) * 0.05
        return w, b

    def bn(d):
        g = jnp.ones((1, d), jnp.float32)   # PyTorch default gamma=1
        b = jnp.zeros((1, d), jnp.float32)  # PyTorch default beta=0
        return g, b

    ew1, eb1 = lin(D_IN, HIDDEN)
    g1, b1 = bn(HIDDEN)
    ew2, eb2 = lin(HIDDEN, LATENT)
    g2, b2 = bn(LATENT)
    mw, mb = lin(LATENT, Z_DIM)
    vw, vb = lin(LATENT, Z_DIM)
    dw1, db1 = lin(Z_DIM, LATENT)
    g3, b3 = bn(LATENT)
    dw2, db2 = lin(LATENT, HIDDEN)
    g4, b4 = bn(HIDDEN)
    dw3, db3 = lin(HIDDEN, D_IN)
    tw1, tb1 = lin(Z_DIM, FP)
    tw2, tb2 = lin(FP, FP)

    return (ew1, eb1, g1, b1, ew2, eb2, g2, b2,
            mw, mb, vw, vb,
            dw1, db1, g3, b3, dw2, db2, g4, b4, dw3, db3,
            tw1, tb1, tw2, tb2)


def _poly_expansion():
    # poly_space[p, s] = (s / seq_len) ** (p + 1)
    lin_space = jnp.arange(0.0, float(SEQ_LEN), 1.0, dtype=jnp.float32) / SEQ_LEN
    poly_space = jnp.stack(
        [lin_space ** float(p + 1) for p in range(TREND_POLY)], axis=0
    )  # (P, S)
    # expansion matrix M[f*P+p, s*F+f'] = poly_space[p, s] * (f == f')
    eye_f = jnp.eye(FEAT_DIM, dtype=jnp.float32)
    m = (poly_space[None, :, :, None] * eye_f[:, None, None, :]).reshape(FP, D_IN)
    return poly_space, m


def pack_params(params):
    """Pack all parameters into one (224, 32) slab (done once, outside jit) so
    the kernel sees a single parameter DMA."""
    (ew1, eb1, g1, b1, ew2, eb2, g2, b2,
     mw, mb, vw, vb,
     dw1, db1, g3, b3, dw2, db2, g4, b4, dw3, db3,
     tw1, tb1, tw2, tb2) = params

    _, m = _poly_expansion()
    tw2m = tw2 @ m                    # (8, 32)  trend_dense2 folded with M
    tb2m = tb2 @ m                    # (1, 32)

    def pad_cols(a):
        return jnp.pad(a, ((0, 0), (0, PAD_W - a.shape[1])))

    mvw = pad_cols(jnp.concatenate([mw, vw], axis=1))                 # (32, 32)
    wcat = jnp.concatenate(
        [dw3, tw2m, jnp.zeros((64 - HIDDEN - FP, D_IN), jnp.float32)], axis=0
    )                                                                  # (64, 32)

    mvb = pad_cols(jnp.concatenate([mb, vb], axis=1))                  # (1, 32)
    bcat = db3 + tb2m                                                  # (1, 32)
    vec_block = jnp.concatenate(
        [eb1, g1, b1, eb2, g2, b2, mvb,
         db1, g3, b3, db2, g4, b4, bcat, pad_cols(tb1),
         jnp.zeros((1, PAD_W), jnp.float32)], axis=0
    )                                                                  # (16, 32)

    slab = jnp.concatenate(
        [ew1, ew2, mvw, dw1, dw2, wcat, pad_cols(tw1), vec_block], axis=0
    )                                                                  # (224, 32)
    assert slab.shape == (SLAB_ROWS, PAD_W)
    return slab


# ---------------------------------------------------------------------------
# pure-JAX reference (mirrors the PyTorch forward) for a silent sanity check
# ---------------------------------------------------------------------------
def reference_forward(x, eps, params):
    (ew1, eb1, g1, b1, ew2, eb2, g2, b2,
     mw, mb, vw, vb,
     dw1, db1, g3, b3, dw2, db2, g4, b4, dw3, db3,
     tw1, tb1, tw2, tb2) = params

    xf = x.reshape(x.shape[0], -1)
    h = _bn_lrelu(xf @ ew1 + eb1, g1, b1)
    h = _bn_lrelu(h @ ew2 + eb2, g2, b2)
    mean = h @ mw + mb
    var = h @ vw + vb
    z = mean + var * eps
    d = _bn_lrelu(z @ dw1 + db1, g3, b3)
    d = _bn_lrelu(d @ dw2 + db2, g4, b4)
    x_hat = (d @ dw3 + db3).reshape(-1, SEQ_LEN, FEAT_DIM)

    tp = jnp.maximum(z @ tw1 + tb1, 0.0)
    tp = (tp @ tw2 + tb2).reshape(-1, FEAT_DIM, TREND_POLY)
    poly_space, _ = _poly_expansion()
    trend = jnp.einsum("bfp,ps->bsf", tp, poly_space)
    return x_hat + trend, mean, var


if __name__ == "__main__":
    key = jax.random.PRNGKey(0)
    k_x, k_eps, k_p = jax.random.split(key, 3)

    x = jax.random.normal(k_x, (B, SEQ_LEN, FEAT_DIM), jnp.float32)
    eps = jax.random.normal(k_eps, (B, Z_DIM), jnp.float32)  # deterministic randn_like
    params = make_params(k_p)
    slab = pack_params(params)

    x_hat, mean, var = trend_vae_forward(x, eps, slab)
    jax.block_until_ready((x_hat, mean, var))

    ref_x_hat, ref_mean, ref_var = reference_forward(x, eps, params)
    assert jnp.allclose(x_hat, ref_x_hat, atol=1e-4, rtol=1e-4)
    assert jnp.allclose(mean, ref_mean, atol=1e-4, rtol=1e-4)
    assert jnp.allclose(var, ref_var, atol=1e-4, rtol=1e-4)

    print("KERNEL_OK")
</pallas_src>

<mosaic_0001>
module attributes {stable_mosaic.version = 11 : i64} {
  func.func @trend_vae_kernel(%arg0: memref<8x32xf32, #tpu.memory_space<vmem>>, %arg1: memref<8x8xf32, #tpu.memory_space<vmem>>, %arg2: memref<224x32xf32, #tpu.memory_space<vmem>>, %arg3: memref<8x48xf32, #tpu.memory_space<vmem>>) attributes {dimension_semantics = [], scalar_prefetch = 0 : i64, scratch_operands = 0 : i64, tpu.core_type = #tpu.core_type<tc>} {
    %c0 = arith.constant 0 : index
    %c0_0 = arith.constant 0 : index
    %0 = vector.load %arg0[%c0, %c0_0] : memref<8x32xf32, #tpu.memory_space<vmem>>, vector<8x32xf32>
    %c0_1 = arith.constant 0 : index
    %c0_2 = arith.constant 0 : index
    %1 = vector.load %arg1[%c0_1, %c0_2] : memref<8x8xf32, #tpu.memory_space<vmem>>, vector<8x8xf32>
    %c208 = arith.constant 208 : index
    %c0_3 = arith.constant 0 : index
    %2 = vector.load %arg2[%c208, %c0_3] : memref<224x32xf32, #tpu.memory_space<vmem>>, vector<16x32xf32>
    %3 = vector.extract_strided_slice %2 {offsets = [0, 0], sizes = [1, 32], strides = [1, 1]} : vector<16x32xf32> to vector<1x32xf32>
    %4 = vector.extract_strided_slice %2 {offsets = [1, 0], sizes = [1, 32], strides = [1, 1]} : vector<16x32xf32> to vector<1x32xf32>
    %5 = vector.extract_strided_slice %2 {offsets = [2, 0], sizes = [1, 32], strides = [1, 1]} : vector<16x32xf32> to vector<1x32xf32>
    %6 = vector.extract_strided_slice %2 {offsets = [3, 0], sizes = [1, 32], strides = [1, 1]} : vector<16x32xf32> to vector<1x32xf32>
    %7 = vector.extract_strided_slice %2 {offsets = [4, 0], sizes = [1, 32], strides = [1, 1]} : vector<16x32xf32> to vector<1x32xf32>
    %8 = vector.extract_strided_slice %2 {offsets = [5, 0], sizes = [1, 32], strides = [1, 1]} : vector<16x32xf32> to vector<1x32xf32>
    %9 = vector.extract_strided_slice %2 {offsets = [6, 0], sizes = [1, 32], strides = [1, 1]} : vector<16x32xf32> to vector<1x32xf32>
    %10 = vector.extract_strided_slice %2 {offsets = [7, 0], sizes = [1, 32], strides = [1, 1]} : vector<16x32xf32> to vector<1x32xf32>
    %11 = vector.extract_strided_slice %2 {offsets = [8, 0], sizes = [1, 32], strides = [1, 1]} : vector<16x32xf32> to vector<1x32xf32>
    %12 = vector.extract_strided_slice %2 {offsets = [9, 0], sizes = [1, 32], strides = [1, 1]} : vector<16x32xf32> to vector<1x32xf32>
    %13 = vector.extract_strided_slice %2 {offsets = [10, 0], sizes = [1, 32], strides = [1, 1]} : vector<16x32xf32> to vector<1x32xf32>
    %14 = vector.extract_strided_slice %2 {offsets = [11, 0], sizes = [1, 32], strides = [1, 1]} : vector<16x32xf32> to vector<1x32xf32>
    %15 = vector.extract_strided_slice %2 {offsets = [12, 0], sizes = [1, 32], strides = [1, 1]} : vector<16x32xf32> to vector<1x32xf32>
    %16 = vector.extract_strided_slice %2 {offsets = [13, 0], sizes = [1, 32], strides = [1, 1]} : vector<16x32xf32> to vector<1x32xf32>
    %17 = vector.extract_strided_slice %2 {offsets = [14, 0], sizes = [1, 32], strides = [1, 1]} : vector<16x32xf32> to vector<1x32xf32>
    %c0_4 = arith.constant 0 : index
    %c0_5 = arith.constant 0 : index
    %18 = vector.load %arg2[%c0_4, %c0_5] : memref<224x32xf32, #tpu.memory_space<vmem>>, vector<32x32xf32>
    %cst = arith.constant dense<0.000000e+00> : vector<8x32xf32>
    %19 = tpu.matmul %0, %18, %cst {dimension_numbers = #tpu.dot_dimension_numbers<[1], [0], [0], [1], [0, 0, 1, 1], [], []>} : vector<8x32xf32>, vector<32x32xf32>, vector<8x32xf32> -> vector<8x32xf32>
    %20 = vector.broadcast %3 : vector<1x32xf32> to vector<8x32xf32>
    %21 = arith.addf %19, %20 : vector<8x32xf32>
    %cst_6 = arith.constant dense<0.000000e+00> : vector<32xf32>
    %22 = vector.multi_reduction <add>, %21, %cst_6 [0] : vector<8x32xf32> to vector<32xf32>
    %23 = vector.shape_cast %22 : vector<32xf32> to vector<1x32xf32>
    %cst_7 = arith.constant 8.000000e+00 : f32
    %24 = vector.broadcast %cst_7 : f32 to vector<1x32xf32>
    %25 = arith.divf %23, %24 : vector<1x32xf32>
    %26 = vector.broadcast %25 : vector<1x32xf32> to vector<8x32xf32>
    %27 = arith.subf %21, %26 : vector<8x32xf32>
    %28 = arith.mulf %27, %27 : vector<8x32xf32>
    %cst_8 = arith.constant dense<0.000000e+00> : vector<32xf32>
    %29 = vector.multi_reduction <add>, %28, %cst_8 [0] : vector<8x32xf32> to vector<32xf32>
    %30 = vector.shape_cast %29 : vector<32xf32> to vector<1x32xf32>
    %cst_9 = arith.constant 8.000000e+00 : f32
    %31 = vector.broadcast %cst_9 : f32 to vector<1x32xf32>
    %32 = arith.divf %30, %31 : vector<1x32xf32>
    %33 = vector.broadcast %25 : vector<1x32xf32> to vector<8x32xf32>
    %34 = arith.subf %21, %33 : vector<8x32xf32>
    %cst_10 = arith.constant 9.99999974E-6 : f32
    %35 = vector.broadcast %cst_10 : f32 to vector<1x32xf32>
    %36 = arith.addf %32, %35 : vector<1x32xf32>
    %37 = math.rsqrt %36 : vector<1x32xf32>
    %38 = vector.broadcast %37 : vector<1x32xf32> to vector<8x32xf32>
    %39 = arith.mulf %34, %38 : vector<8x32xf32>
    %40 = vector.broadcast %4 : vector<1x32xf32> to vector<8x32xf32>
    %41 = arith.mulf %39, %40 : vector<8x32xf32>
    %42 = vector.broadcast %5 : vector<1x32xf32> to vector<8x32xf32>
    %43 = arith.addf %41, %42 : vector<8x32xf32>
    %cst_11 = arith.constant 0.000000e+00 : f32
    %44 = vector.broadcast %cst_11 : f32 to vector<8x32xf32>
    %45 = arith.cmpf ogt, %43, %44 : vector<8x32xf32>
    %cst_12 = arith.constant 2.000000e-01 : f32
    %46 = vector.broadcast %cst_12 : f32 to vector<8x32xf32>
    %47 = arith.mulf %46, %43 : vector<8x32xf32>
    %48 = arith.select %45, %43, %47 : vector<8x32xi1>, vector<8x32xf32>
    %c32 = arith.constant 32 : index
    %c0_13 = arith.constant 0 : index
    %49 = vector.load %arg2[%c32, %c0_13] : memref<224x32xf32, #tpu.memory_space<vmem>>, vector<32x32xf32>
    %cst_14 = arith.constant dense<0.000000e+00> : vector<8x32xf32>
    %50 = tpu.matmul %48, %49, %cst_14 {dimension_numbers = #tpu.dot_dimension_numbers<[1], [0], [0], [1], [0, 0, 1, 1], [], []>} : vector<8x32xf32>, vector<32x32xf32>, vector<8x32xf32> -> vector<8x32xf32>
    %51 = vector.broadcast %6 : vector<1x32xf32> to vector<8x32xf32>
    %52 = arith.addf %50, %51 : vector<8x32xf32>
    %cst_15 = arith.constant dense<0.000000e+00> : vector<32xf32>
    %53 = vector.multi_reduction <add>, %52, %cst_15 [0] : vector<8x32xf32> to vector<32xf32>
    %54 = vector.shape_cast %53 : vector<32xf32> to vector<1x32xf32>
    %cst_16 = arith.constant 8.000000e+00 : f32
    %55 = vector.broadcast %cst_16 : f32 to vector<1x32xf32>
    %56 = arith.divf %54, %55 : vector<1x32xf32>
    %57 = vector.broadcast %56 : vector<1x32xf32> to vector<8x32xf32>
    %58 = arith.subf %52, %57 : vector<8x32xf32>
    %59 = arith.mulf %58, %58 : vector<8x32xf32>
    %cst_17 = arith.constant dense<0.000000e+00> : vector<32xf32>
    %60 = vector.multi_reduction <add>, %59, %cst_17 [0] : vector<8x32xf32> to vector<32xf32>
    %61 = vector.shape_cast %60 : vector<32xf32> to vector<1x32xf32>
    %cst_18 = arith.constant 8.000000e+00 : f32
    %62 = vector.broadcast %cst_18 : f32 to vector<1x32xf32>
    %63 = arith.divf %61, %62 : vector<1x32xf32>
    %64 = vector.broadcast %56 : vector<1x32xf32> to vector<8x32xf32>
    %65 = arith.subf %52, %64 : vector<8x32xf32>
    %cst_19 = arith.constant 9.99999974E-6 : f32
    %66 = vector.broadcast %cst_19 : f32 to vector<1x32xf32>
    %67 = arith.addf %63, %66 : vector<1x32xf32>
    %68 = math.rsqrt %67 : vector<1x32xf32>
    %69 = vector.broadcast %68 : vector<1x32xf32> to vector<8x32xf32>
    %70 = arith.mulf %65, %69 : vector<8x32xf32>
    %71 = vector.broadcast %7 : vector<1x32xf32> to vector<8x32xf32>
    %72 = arith.mulf %70, %71 : vector<8x32xf32>
    %73 = vector.broadcast %8 : vector<1x32xf32> to vector<8x32xf32>
    %74 = arith.addf %72, %73 : vector<8x32xf32>
    %cst_20 = arith.constant 0.000000e+00 : f32
    %75 = vector.broadcast %cst_20 : f32 to vector<8x32xf32>
    %76 = arith.cmpf ogt, %74, %75 : vector<8x32xf32>
    %cst_21 = arith.constant 2.000000e-01 : f32
    %77 = vector.broadcast %cst_21 : f32 to vector<8x32xf32>
    %78 = arith.mulf %77, %74 : vector<8x32xf32>
    %79 = arith.select %76, %74, %78 : vector<8x32xi1>, vector<8x32xf32>
    %c64 = arith.constant 64 : index
    %c0_22 = arith.constant 0 : index
    %80 = vector.load %arg2[%c64, %c0_22] : memref<224x32xf32, #tpu.memory_space<vmem>>, vector<32x32xf32>
    %cst_23 = arith.constant dense<0.000000e+00> : vector<8x32xf32>
    %81 = tpu.matmul %79, %80, %cst_23 {dimension_numbers = #tpu.dot_dimension_numbers<[1], [0], [0], [1], [0, 0, 1, 1], [], []>} : vector<8x32xf32>, vector<32x32xf32>, vector<8x32xf32> -> vector<8x32xf32>
    %82 = vector.broadcast %9 : vector<1x32xf32> to vector<8x32xf32>
    %83 = arith.addf %81, %82 : vector<8x32xf32>
    %84 = vector.extract_strided_slice %83 {offsets = [0, 0], sizes = [8, 8], strides = [1, 1]} : vector<8x32xf32> to vector<8x8xf32>
    %85 = vector.extract_strided_slice %83 {offsets = [0, 8], sizes = [8, 8], strides = [1, 1]} : vector<8x32xf32> to vector<8x8xf32>
    %86 = arith.mulf %85, %1 : vector<8x8xf32>
    %87 = arith.addf %84, %86 : vector<8x8xf32>
    %c96 = arith.constant 96 : index
    %c0_24 = arith.constant 0 : index
    %88 = vector.load %arg2[%c96, %c0_24] : memref<224x32xf32, #tpu.memory_space<vmem>>, vector<8x32xf32>
    %cst_25 = arith.constant dense<0.000000e+00> : vector<8x32xf32>
    %89 = tpu.matmul %87, %88, %cst_25 {dimension_numbers = #tpu.dot_dimension_numbers<[1], [0], [0], [1], [0, 0, 1, 1], [], []>} : vector<8x8xf32>, vector<8x32xf32>, vector<8x32xf32> -> vector<8x32xf32>
    %90 = vector.broadcast %10 : vector<1x32xf32> to vector<8x32xf32>
    %91 = arith.addf %89, %90 : vector<8x32xf32>
    %cst_26 = arith.constant dense<0.000000e+00> : vector<32xf32>
    %92 = vector.multi_reduction <add>, %91, %cst_26 [0] : vector<8x32xf32> to vector<32xf32>
    %93 = vector.shape_cast %92 : vector<32xf32> to vector<1x32xf32>
    %cst_27 = arith.constant 8.000000e+00 : f32
    %94 = vector.broadcast %cst_27 : f32 to vector<1x32xf32>
    %95 = arith.divf %93, %94 : vector<1x32xf32>
    %96 = vector.broadcast %95 : vector<1x32xf32> to vector<8x32xf32>
    %97 = arith.subf %91, %96 : vector<8x32xf32>
    %98 = arith.mulf %97, %97 : vector<8x32xf32>
    %cst_28 = arith.constant dense<0.000000e+00> : vector<32xf32>
    %99 = vector.multi_reduction <add>, %98, %cst_28 [0] : vector<8x32xf32> to vector<32xf32>
    %100 = vector.shape_cast %99 : vector<32xf32> to vector<1x32xf32>
    %cst_29 = arith.constant 8.000000e+00 : f32
    %101 = vector.broadcast %cst_29 : f32 to vector<1x32xf32>
    %102 = arith.divf %100, %101 : vector<1x32xf32>
    %103 = vector.broadcast %95 : vector<1x32xf32> to vector<8x32xf32>
    %104 = arith.subf %91, %103 : vector<8x32xf32>
    %cst_30 = arith.constant 9.99999974E-6 : f32
    %105 = vector.broadcast %cst_30 : f32 to vector<1x32xf32>
    %106 = arith.addf %102, %105 : vector<1x32xf32>
    %107 = math.rsqrt %106 : vector<1x32xf32>
    %108 = vector.broadcast %107 : vector<1x32xf32> to vector<8x32xf32>
    %109 = arith.mulf %104, %108 : vector<8x32xf32>
    %110 = vector.broadcast %11 : vector<1x32xf32> to vector<8x32xf32>
    %111 = arith.mulf %109, %110 : vector<8x32xf32>
    %112 = vector.broadcast %12 : vector<1x32xf32> to vector<8x32xf32>
    %113 = arith.addf %111, %112 : vector<8x32xf32>
    %cst_31 = arith.constant 0.000000e+00 : f32
    %114 = vector.broadcast %cst_31 : f32 to vector<8x32xf32>
    %115 = arith.cmpf ogt, %113, %114 : vector<8x32xf32>
    %cst_32 = arith.constant 2.000000e-01 : f32
    %116 = vector.broadcast %cst_32 : f32 to vector<8x32xf32>
    %117 = arith.mulf %116, %113 : vector<8x32xf32>
    %118 = arith.select %115, %113, %117 : vector<8x32xi1>, vector<8x32xf32>
    %c104 = arith.constant 104 : index
    %c0_33 = arith.constant 0 : index
    %119 = vector.load %arg2[%c104, %c0_33] : memref<224x32xf32, #tpu.memory_space<vmem>>, vector<32x32xf32>
    %cst_34 = arith.constant dense<0.000000e+00> : vector<8x32xf32>
    %120 = tpu.matmul %118, %119, %cst_34 {dimension_numbers = #tpu.dot_dimension_numbers<[1], [0], [0], [1], [0, 0, 1, 1], [], []>} : vector<8x32xf32>, vector<32x32xf32>, vector<8x32xf32> -> vector<8x32xf32>
    %121 = vector.broadcast %13 : vector<1x32xf32> to vector<8x32xf32>
    %122 = arith.addf %120, %121 : vector<8x32xf32>
    %cst_35 = arith.constant dense<0.000000e+00> : vector<32xf32>
    %123 = vector.multi_reduction <add>, %122, %cst_35 [0] : vector<8x32xf32> to vector<32xf32>
    %124 = vector.shape_cast %123 : vector<32xf32> to vector<1x32xf32>
    %cst_36 = arith.constant 8.000000e+00 : f32
    %125 = vector.broadcast %cst_36 : f32 to vector<1x32xf32>
    %126 = arith.divf %124, %125 : vector<1x32xf32>
    %127 = vector.broadcast %126 : vector<1x32xf32> to vector<8x32xf32>
    %128 = arith.subf %122, %127 : vector<8x32xf32>
    %129 = arith.mulf %128, %128 : vector<8x32xf32>
    %cst_37 = arith.constant dense<0.000000e+00> : vector<32xf32>
    %130 = vector.multi_reduction <add>, %129, %cst_37 [0] : vector<8x32xf32> to vector<32xf32>
    %131 = vector.shape_cast %130 : vector<32xf32> to vector<1x32xf32>
    %cst_38 = arith.constant 8.000000e+00 : f32
    %132 = vector.broadcast %cst_38 : f32 to vector<1x32xf32>
    %133 = arith.divf %131, %132 : vector<1x32xf32>
    %134 = vector.broadcast %126 : vector<1x32xf32> to vector<8x32xf32>
    %135 = arith.subf %122, %134 : vector<8x32xf32>
    %cst_39 = arith.constant 9.99999974E-6 : f32
    %136 = vector.broadcast %cst_39 : f32 to vector<1x32xf32>
    %137 = arith.addf %133, %136 : vector<1x32xf32>
    %138 = math.rsqrt %137 : vector<1x32xf32>
    %139 = vector.broadcast %138 : vector<1x32xf32> to vector<8x32xf32>
    %140 = arith.mulf %135, %139 : vector<8x32xf32>
    %141 = vector.broadcast %14 : vector<1x32xf32> to vector<8x32xf32>
    %142 = arith.mulf %140, %141 : vector<8x32xf32>
    %143 = vector.broadcast %15 : vector<1x32xf32> to vector<8x32xf32>
    %144 = arith.addf %142, %143 : vector<8x32xf32>
    %cst_40 = arith.constant 0.000000e+00 : f32
    %145 = vector.broadcast %cst_40 : f32 to vector<8x32xf32>
    %146 = arith.cmpf ogt, %144, %145 : vector<8x32xf32>
    %cst_41 = arith.constant 2.000000e-01 : f32
    %147 = vector.broadcast %cst_41 : f32 to vector<8x32xf32>
    %148 = arith.mulf %147, %144 : vector<8x32xf32>
    %149 = arith.select %146, %144, %148 : vector<8x32xi1>, vector<8x32xf32>
    %c200 = arith.constant 200 : index
    %c0_42 = arith.constant 0 : index
    %150 = vector.load %arg2[%c200, %c0_42] : memref<224x32xf32, #tpu.memory_space<vmem>>, vector<8x32xf32>
    %cst_43 = arith.constant dense<0.000000e+00> : vector<8x32xf32>
    %151 = tpu.matmul %87, %150, %cst_43 {dimension_numbers = #tpu.dot_dimension_numbers<[1], [0], [0], [1], [0, 0, 1, 1], [], []>} : vector<8x8xf32>, vector<8x32xf32>, vector<8x32xf32> -> vector<8x32xf32>
    %152 = vector.broadcast %17 : vector<1x32xf32> to vector<8x32xf32>
    %153 = arith.addf %151, %152 : vector<8x32xf32>
    %cst_44 = arith.constant 0.000000e+00 : f32
    %154 = vector.broadcast %cst_44 : f32 to vector<8x32xf32>
    %155 = arith.maximumf %153, %154 : vector<8x32xf32>
    %156 = tpu.concatenate %149, %155 in 1 : vector<8x32xf32>, vector<8x32xf32> -> vector<8x64xf32>
    %c136 = arith.constant 136 : index
    %c0_45 = arith.constant 0 : index
    %157 = vector.load %arg2[%c136, %c0_45] : memref<224x32xf32, #tpu.memory_space<vmem>>, vector<64x32xf32>
    %cst_46 = arith.constant dense<0.000000e+00> : vector<8x32xf32>
    %158 = tpu.matmul %156, %157, %cst_46 {dimension_numbers = #tpu.dot_dimension_numbers<[1], [0], [0], [1], [0, 0, 1, 1], [], []>} : vector<8x64xf32>, vector<64x32xf32>, vector<8x32xf32> -> vector<8x32xf32>
    %159 = vector.broadcast %16 : vector<1x32xf32> to vector<8x32xf32>
    %160 = arith.addf %158, %159 : vector<8x32xf32>
    %161 = tpu.concatenate %160, %84, %85 in 1 : vector<8x32xf32>, vector<8x8xf32>, vector<8x8xf32> -> vector<8x48xf32>
    %c0_47 = arith.constant 0 : index
    %c0_48 = arith.constant 0 : index
    %162 = vector.load %arg3[%c0_47, %c0_48] : memref<8x48xf32, #tpu.memory_space<vmem>>, vector<8x48xf32>
    tpu.vector_store %arg3[%c0_47, %c0_48], %161 {strides = array<i32>} : memref<8x48xf32, #tpu.memory_space<vmem>>, vector<8x48xf32>,
    return
  }
}

</mosaic_0001>

<llo_original>
// kernel: trend_vae_forward.1
$region0: #{trend_vae_forward.1}
  #allocation0 [shape = 'u32[]', space=smem, size = 0x4, offset = 0x4, fixed_abs, tag = 'smem constant byte address 0x4 - core index']
  #allocation1 [shape = 'u32[72,128]{1,0:T(1,128)}', space=vmem, size = 0x9000, scoped, tag = 'internal scratch']
  %s0 = inlined_call_operand.vmem [shape: f32[8,32], index: 0, kind: input, shape index: {}]
  %s1 = inlined_call_operand.vmem [shape: f32[8,8], index: 1, kind: input, shape index: {}]
  %s2 = inlined_call_operand.vmem [shape: f32[224,32], index: 2, kind: input, shape index: {}]
  %s3 = inlined_call_operand.vmem [shape: f32[8,48], index: 3, kind: output, shape index: {}]
  %s4 = sld [smem:[#allocation0]]
  $region22: #{trend_vae_forward.1} parent=0
    _
  %s6 = ssub.s32 1, %s4
  %s7 = scalar_select 0, %s6, %s4
  // Predicated region
  $region2: #{trend_vae_forward.1} parent=0 // pred_check
    _
  $region3: #{trend_vae_forward.1} parent=0 // pred_check_branch
    %9 = sbr.rel (0) target = $region5
  $region4: #{trend_vae_forward.1} parent=0 // pred_region
    _
  $region5: #{trend_vae_forward.1} parent=0 // pred_fallthru
    _
  // Predicated region
  $region6: #{trend_vae_forward.1} parent=0 // pred_check
    _
  $region7: #{trend_vae_forward.1} parent=0 // pred_check_branch
    %11 = sbr.rel (0) target = $region9
  $region8: #{trend_vae_forward.1} parent=0 // pred_region
    _
  $region9: #{trend_vae_forward.1} parent=0 // pred_fallthru
    _
  // Predicated region
  $region10: #{trend_vae_forward.1} parent=0 // pred_check
    _
  $region11: #{trend_vae_forward.1} parent=0 // pred_check_branch
    %13 = sbr.rel (0) target = $region13
  $region12: #{trend_vae_forward.1} parent=0 // pred_region
    _
  $region13: #{trend_vae_forward.1} parent=0 // pred_fallthru
    _
  %v14 = vld [vmem:[%s0] sm:$0xff]
  %v15 = vld [vmem:[%s1] sm:$0xff]
  %v16 = vld [vmem:[%s2 + $0xd0] sm:$0xff]
  %v17 = vld [vmem:[%s2 + $0xd8] sm:$0xff]
  %v18 = vld [vmem:[%s2] sm:$0xff]
  %v19 = vld [vmem:[%s2 + $0x8] sm:$0xff]
  %v20 = vld [vmem:[%s2 + $0x10] sm:$0xff]
  %v21 = vld [vmem:[%s2 + $0x18] sm:$0xff]
  %v22 = vperm.slane %v16, 0
  %vm23 = vcmask 261120
  %v25 = vsel %vm23, %v14, 0
  %27 = vmatpush.msra.mxu0 0.0
  %28 = vmatpush.msra.mxu0 0.0
  %29 = vmatpush.msra.mxu0 0.0
  %30 = vmatpush.msra.mxu0 0.0
  %31 = vmatpush.msra.mxu0 0.0
  %32 = vmatpush.msra.mxu0 0.0
  %33 = vmatpush.msra.mxu0 0.0
  %34 = vmatpush.msra.mxu0 0.0
  %35 = vmatpush.msra.mxu0 0.0
  %36 = vmatpush.msra.mxu0 0.0
  %37 = vmatpush.msra.mxu0 0.0
  %38 = vmatpush.msra.mxu0 0.0
  %39 = vmatpush.msra.mxu0 %v21
  %40 = vmatpush.msra.mxu0 %v20
  %41 = vmatpush.msra.mxu0 %v19
  %42 = vmatpush.msra.mxu0 %v18
  %43 = vmatmul.f32.gmra.mxu0 %v25
  %v44 = vpop.f32.mrf.mxu0
  %v45 = vadd.f32 %v22, %v44
  %46 = vdwg.mxu0
  %v47 = vsel %vm23, %v45, 0.0
  %v48 = vrot.slane %v47, 4
  %v49 = vadd.f32 %v47, %v48
  %v50 = vrot.slane %v49, 2
  %v51 = vadd.f32 %v49, %v50
  %v52 = vrot.slane %v51, 1
  %v53 = vadd.f32 %v51, %v52
  %v54 = vrcp.pop 8.0
  %v55 = vmul.f32 8.0, %v54
  %v56 = vsub.f32 1.0, %v55
  %v57 = vmul.f32 %v54, %v56
  %v58 = vadd.f32 %v54, %v57
  %vm59 = vweird.f32 %v54
  %v60 = vsel %vm59, %v54, %v58
  %v61 = vmul.f32 %v53, %v60
  %v62 = vsub.f32 %v45, %v61
  %v63 = vmul.f32 %v62, %v62
  %v64 = vsel %vm23, %v63, 0.0
  %v65 = vrot.slane %v64, 4
  %v66 = vadd.f32 %v64, %v65
  %v67 = vrot.slane %v66, 2
  %v68 = vadd.f32 %v66, %v67
  %v69 = vrot.slane %v68, 1
  %v70 = vadd.f32 %v68, %v69
  %v71 = vmul.f32 %v70, %v60
  %v72 = vadd.f32 %v71, 1e-05
  %v73 = vrsqrt.pop %v72
  %v74 = vmul.f32 %v73, %v72
  %v75 = vmul.f32 %v74, %v73
  %v76 = vmul.f32 0.5, %v75
  %v77 = vsub.f32 1.5, %v76
  %v78 = vmul.f32 %v73, %v77
  %vm79 = vweird.f32 %v72
  %vm80 = vweird.f32 %v73
  %vm81 = vmor %vm79, %vm80
  %v82 = vsel %vm81, %v73, %v78
  %v83 = vmul.f32 %v62, %v82
  %v84 = vperm.slane %v16, 1
  %v85 = vmul.f32 %v83, %v84
  %v86 = vperm.slane %v16, 2
  %v87 = vadd.f32 %v85, %v86
  %vm88 = vcmp.gt.f32.partialorder %v87, 0.0
  %v89 = vmul.f32 %v87, 0.2
  %v90 = vsel %vm88, %v87, %v89
  %v91 = vld [vmem:[%s2 + $0x20] sm:$0xff]
  %v92 = vld [vmem:[%s2 + $0x28] sm:$0xff]
  %v93 = vld [vmem:[%s2 + $0x30] sm:$0xff]
  %v94 = vld [vmem:[%s2 + $0x38] sm:$0xff]
  %v95 = vperm.slane %v16, 3
  %v97 = vsel %vm23, %v90, 0
  %99 = vmatpush.msra.mxu0 0.0
  %100 = vmatpush.msra.mxu0 0.0
  %101 = vmatpush.msra.mxu0 0.0
  %102 = vmatpush.msra.mxu0 0.0
  %103 = vmatpush.msra.mxu0 0.0
  %104 = vmatpush.msra.mxu0 0.0
  %105 = vmatpush.msra.mxu0 0.0
  %106 = vmatpush.msra.mxu0 0.0
  %107 = vmatpush.msra.mxu0 0.0
  %108 = vmatpush.msra.mxu0 0.0
  %109 = vmatpush.msra.mxu0 0.0
  %110 = vmatpush.msra.mxu0 0.0
  %111 = vmatpush.msra.mxu0 %v94
  %112 = vmatpush.msra.mxu0 %v93
  %113 = vmatpush.msra.mxu0 %v92
  %114 = vmatpush.msra.mxu0 %v91
  %115 = vmatmul.f32.gmra.mxu0 %v97
  %v116 = vpop.f32.mrf.mxu0
  %v117 = vadd.f32 %v95, %v116
  %118 = vdwg.mxu0
  %v119 = vsel %vm23, %v117, 0.0
  %v120 = vrot.slane %v119, 4
  %v121 = vadd.f32 %v119, %v120
  %v122 = vrot.slane %v121, 2
  %v123 = vadd.f32 %v121, %v122
  %v124 = vrot.slane %v123, 1
  %v125 = vadd.f32 %v123, %v124
  %v126 = vmul.f32 %v125, %v60
  %v127 = vsub.f32 %v117, %v126
  %v128 = vmul.f32 %v127, %v127
  %v129 = vsel %vm23, %v128, 0.0
  %v130 = vrot.slane %v129, 4
  %v131 = vadd.f32 %v129, %v130
  %v132 = vrot.slane %v131, 2
  %v133 = vadd.f32 %v131, %v132
  %v134 = vrot.slane %v133, 1
  %v135 = vadd.f32 %v133, %v134
  %v136 = vmul.f32 %v135, %v60
  %v137 = vadd.f32 %v136, 1e-05
  %v138 = vrsqrt.pop %v137
  %v139 = vmul.f32 %v138, %v137
  %v140 = vmul.f32 %v139, %v138
  %v141 = vmul.f32 0.5, %v140
  %v142 = vsub.f32 1.5, %v141
  %v143 = vmul.f32 %v138, %v142
  %vm144 = vweird.f32 %v137
  %vm145 = vweird.f32 %v138
  %vm146 = vmor %vm144, %vm145
  %v147 = vsel %vm146, %v138, %v143
  %v148 = vmul.f32 %v127, %v147
  %v149 = vperm.slane %v16, 4
  %v150 = vmul.f32 %v148, %v149
  %v151 = vperm.slane %v16, 5
  %v152 = vadd.f32 %v150, %v151
  %vm153 = vcmp.gt.f32.partialorder %v152, 0.0
  %v154 = vmul.f32 %v152, 0.2
  %v155 = vsel %vm153, %v152, %v154
  %v156 = vld [vmem:[%s2 + $0x40] sm:$0xff]
  %v157 = vld [vmem:[%s2 + $0x48] sm:$0xff]
  %v158 = vld [vmem:[%s2 + $0x50] sm:$0xff]
  %v159 = vld [vmem:[%s2 + $0x58] sm:$0xff]
  %v160 = vperm.slane %v16, 6
  %v162 = vsel %vm23, %v155, 0
  %164 = vmatpush.msra.mxu0 0.0
  %165 = vmatpush.msra.mxu0 0.0
  %166 = vmatpush.msra.mxu0 0.0
  %167 = vmatpush.msra.mxu0 0.0
  %168 = vmatpush.msra.mxu0 0.0
  %169 = vmatpush.msra.mxu0 0.0
  %170 = vmatpush.msra.mxu0 0.0
  %171 = vmatpush.msra.mxu0 0.0
  %172 = vmatpush.msra.mxu0 0.0
  %173 = vmatpush.msra.mxu0 0.0
  %174 = vmatpush.msra.mxu0 0.0
  %175 = vmatpush.msra.mxu0 0.0
  %176 = vmatpush.msra.mxu0 %v159
  %177 = vmatpush.msra.mxu0 %v158
  %178 = vmatpush.msra.mxu0 %v157
  %179 = vmatpush.msra.mxu0 %v156
  %180 = vmatmul.f32.gmra.mxu0 %v162
  %v181 = vpop.f32.mrf.mxu0
  %v182 = vadd.f32 %v160, %v181
  %183 = vdwg.mxu0
  %185 = vrot.lane.b32.xlu0 %v15, 8
  %v186 = vpop.permute.xlu0 %185
  %v188 = vmul.f32 %v182, %v186
  %190 = vrot.lane.b32.xlu0 %v188, 120
  %v191 = vpop.permute.xlu0 %190
  %v193 = vadd.f32 %v182, %v191
  %v194 = vld [vmem:[%s2 + $0x60] sm:$0xff]
  %v195 = vperm.slane %v16, 7
  %vm196 = vcmask 64512
  %v198 = vsel %vm196, %v193, 0
  %200 = vmatpush.msra.mxu0 0.0
  %201 = vmatpush.msra.mxu0 0.0
  %202 = vmatpush.msra.mxu0 0.0
  %203 = vmatpush.msra.mxu0 0.0
  %204 = vmatpush.msra.mxu0 0.0
  %205 = vmatpush.msra.mxu0 0.0
  %206 = vmatpush.msra.mxu0 0.0
  %207 = vmatpush.msra.mxu0 0.0
  %208 = vmatpush.msra.mxu0 0.0
  %209 = vmatpush.msra.mxu0 0.0
  %210 = vmatpush.msra.mxu0 0.0
  %211 = vmatpush.msra.mxu0 0.0
  %212 = vmatpush.msra.mxu0 0.0
  %213 = vmatpush.msra.mxu0 0.0
  %214 = vmatpush.msra.mxu0 0.0
  %215 = vmatpush.msra.mxu0 %v194
  %216 = vmatmul.f32.gmra.mxu0 %v198
  %v217 = vpop.f32.mrf.mxu0
  %v218 = vadd.f32 %v195, %v217
  %219 = vdwg.mxu0
  %v220 = vsel %vm23, %v218, 0.0
  %v221 = vrot.slane %v220, 4
  %v222 = vadd.f32 %v220, %v221
  %v223 = vrot.slane %v222, 2
  %v224 = vadd.f32 %v222, %v223
  %v225 = vrot.slane %v224, 1
  %v226 = vadd.f32 %v224, %v225
  %v227 = vmul.f32 %v226, %v60
  %v228 = vsub.f32 %v218, %v227
  %v229 = vmul.f32 %v228, %v228
  %v230 = vsel %vm23, %v229, 0.0
  %v231 = vrot.slane %v230, 4
  %v232 = vadd.f32 %v230, %v231
  %v233 = vrot.slane %v232, 2
  %v234 = vadd.f32 %v232, %v233
  %v235 = vrot.slane %v234, 1
  %v236 = vadd.f32 %v234, %v235
  %v237 = vmul.f32 %v236, %v60
  %v238 = vadd.f32 %v237, 1e-05
  %v239 = vrsqrt.pop %v238
  %v240 = vmul.f32 %v239, %v238
  %v241 = vmul.f32 %v240, %v239
  %v242 = vmul.f32 0.5, %v241
  %v243 = vsub.f32 1.5, %v242
  %v244 = vmul.f32 %v239, %v243
  %vm245 = vweird.f32 %v238
  %vm246 = vweird.f32 %v239
  %vm247 = vmor %vm245, %vm246
  %v248 = vsel %vm247, %v239, %v244
  %v249 = vmul.f32 %v228, %v248
  %v250 = vperm.slane %v17, 0
  %v251 = vmul.f32 %v249, %v250
  %v252 = vperm.slane %v17, 1
  %v253 = vadd.f32 %v251, %v252
  %vm254 = vcmp.gt.f32.partialorder %v253, 0.0
  %v255 = vmul.f32 %v253, 0.2
  %v256 = vsel %vm254, %v253, %v255
  %v257 = vld [vmem:[%s2 + $0x68] sm:$0xff]
  %v258 = vld [vmem:[%s2 + $0x70] sm:$0xff]
  %v259 = vld [vmem:[%s2 + $0x78] sm:$0xff]
  %v260 = vld [vmem:[%s2 + $0x80] sm:$0xff]
  %v261 = vperm.slane %v17, 2
  %v263 = vsel %vm23, %v256, 0
  %265 = vmatpush.msra.mxu0 0.0
  %266 = vmatpush.msra.mxu0 0.0
  %267 = vmatpush.msra.mxu0 0.0
  %268 = vmatpush.msra.mxu0 0.0
  %269 = vmatpush.msra.mxu0 0.0
  %270 = vmatpush.msra.mxu0 0.0
  %271 = vmatpush.msra.mxu0 0.0
  %272 = vmatpush.msra.mxu0 0.0
  %273 = vmatpush.msra.mxu0 0.0
  %274 = vmatpush.msra.mxu0 0.0
  %275 = vmatpush.msra.mxu0 0.0
  %276 = vmatpush.msra.mxu0 0.0
  %277 = vmatpush.msra.mxu0 %v260
  %278 = vmatpush.msra.mxu0 %v259
  %279 = vmatpush.msra.mxu0 %v258
  %280 = vmatpush.msra.mxu0 %v257
  %281 = vmatmul.f32.gmra.mxu0 %v263
  %v282 = vpop.f32.mrf.mxu0
  %v283 = vadd.f32 %v261, %v282
  %284 = vdwg.mxu0
  %v285 = vsel %vm23, %v283, 0.0
  %v286 = vrot.slane %v285, 4
  %v287 = vadd.f32 %v285, %v286
  %v288 = vrot.slane %v287, 2
  %v289 = vadd.f32 %v287, %v288
  %v290 = vrot.slane %v289, 1
  %v291 = vadd.f32 %v289, %v290
  %v292 = vmul.f32 %v291, %v60
  %v293 = vsub.f32 %v283, %v292
  %v294 = vmul.f32 %v293, %v293
  %v295 = vsel %vm23, %v294, 0.0
  %v296 = vrot.slane %v295, 4
  %v297 = vadd.f32 %v295, %v296
  %v298 = vrot.slane %v297, 2
  %v299 = vadd.f32 %v297, %v298
  %v300 = vrot.slane %v299, 1
  %v301 = vadd.f32 %v299, %v300
  %v302 = vmul.f32 %v301, %v60
  %v303 = vadd.f32 %v302, 1e-05
  %v304 = vrsqrt.pop %v303
  %v305 = vmul.f32 %v304, %v303
  %v306 = vmul.f32 %v305, %v304
  %v307 = vmul.f32 0.5, %v306
  %v308 = vsub.f32 1.5, %v307
  %v309 = vmul.f32 %v304, %v308
  %vm310 = vweird.f32 %v303
  %vm311 = vweird.f32 %v304
  %vm312 = vmor %vm310, %vm311
  %v313 = vsel %vm312, %v304, %v309
  %v314 = vmul.f32 %v293, %v313
  %v315 = vperm.slane %v17, 3
  %v316 = vmul.f32 %v314, %v315
  %v317 = vperm.slane %v17, 4
  %v318 = vadd.f32 %v316, %v317
  %vm319 = vcmp.gt.f32.partialorder %v318, 0.0
  %v320 = vmul.f32 %v318, 0.2
  %v321 = vsel %vm319, %v318, %v320
  %v322 = vld [vmem:[%s2 + $0xc8] sm:$0xff]
  %v323 = vperm.slane %v17, 6
  %324 = vmatpush.msra.mxu0 0.0
  %325 = vmatpush.msra.mxu0 0.0
  %326 = vmatpush.msra.mxu0 0.0
  %327 = vmatpush.msra.mxu0 0.0
  %328 = vmatpush.msra.mxu0 0.0
  %329 = vmatpush.msra.mxu0 0.0
  %330 = vmatpush.msra.mxu0 0.0
  %331 = vmatpush.msra.mxu0 0.0
  %332 = vmatpush.msra.mxu0 0.0
  %333 = vmatpush.msra.mxu0 0.0
  %334 = vmatpush.msra.mxu0 0.0
  %335 = vmatpush.msra.mxu0 0.0
  %336 = vmatpush.msra.mxu0 0.0
  %337 = vmatpush.msra.mxu0 0.0
  %338 = vmatpush.msra.mxu0 0.0
  %339 = vmatpush.msra.mxu0 %v322
  %340 = vmatmul.f32.gmra.mxu0 %v198
  %v341 = vpop.f32.mrf.mxu0
  %v342 = vadd.f32 %v323, %v341
  %343 = vdwg.mxu0
  %v344 = vmax.f32 %v342, 0.0
  %346 = vrot.lane.b32.xlu0 %v344, 32
  %v347 = vpop.permute.xlu0 %346
  %v349 = vsel %vm23, %v321, %v347
  %v350 = vld [vmem:[%s2 + $0x88] sm:$0xff]
  %v351 = vld [vmem:[%s2 + $0x90] sm:$0xff]
  %v352 = vld [vmem:[%s2 + $0x98] sm:$0xff]
  %v353 = vld [vmem:[%s2 + $0xa0] sm:$0xff]
  %v354 = vld [vmem:[%s2 + $0xa8] sm:$0xff]
  %v355 = vld [vmem:[%s2 + $0xb0] sm:$0xff]
  %v356 = vld [vmem:[%s2 + $0xb8] sm:$0xff]
  %v357 = vld [vmem:[%s2 + $0xc0] sm:$0xff]
  %v358 = vperm.slane %v17, 5
  %vm359 = vcmask 523264
  %v361 = vsel %vm359, %v349, 0
  %363 = vmatpush.msra.mxu0 0.0
  %364 = vmatpush.msra.mxu0 0.0
  %365 = vmatpush.msra.mxu0 0.0
  %366 = vmatpush.msra.mxu0 0.0
  %367 = vmatpush.msra.mxu0 0.0
  %368 = vmatpush.msra.mxu0 0.0
  %369 = vmatpush.msra.mxu0 0.0
  %370 = vmatpush.msra.mxu0 0.0
  %371 = vmatpush.msra.mxu0 %v357
  %372 = vmatpush.msra.mxu0 %v356
  %373 = vmatpush.msra.mxu0 %v355
  %374 = vmatpush.msra.mxu0 %v354
  %375 = vmatpush.msra.mxu0 %v353
  %376 = vmatpush.msra.mxu0 %v352
  %377 = vmatpush.msra.mxu0 %v351
  %378 = vmatpush.msra.mxu0 %v350
  %379 = vmatmul.f32.gmra.mxu0 %v361
  %v380 = vpop.f32.mrf.mxu0
  %v381 = vadd.f32 %v358, %v380
  %382 = vdwg.mxu0
  %384 = vrot.lane.b32.xlu0 %v182, 32
  %v385 = vpop.permute.xlu0 %384
  %v387 = vsel %vm23, %v381, %v385
  %vm388 = vcmask 326656
  %v389 = vsel %vm388, %v387, %v385
  %vm390 = vcmask 392192
  %391 = vst.msk [vmem:[%s3] sm:$0xff] %vm390, %v389
  // Predicated region
  $region14: #{trend_vae_forward.1} parent=0 // pred_check
    _
  $region15: #{trend_vae_forward.1} parent=0 // pred_check_branch
    %393 = sbr.rel (0) target = $region17
  $region16: #{trend_vae_forward.1} parent=0 // pred_region
    _
  $region17: #{trend_vae_forward.1} parent=0 // pred_fallthru
    _
  // Predicated region
  $region18: #{trend_vae_forward.1} parent=0 // pred_check
    _
  $region19: #{trend_vae_forward.1} parent=0 // pred_check_branch
    %395 = sbr.rel (0) target = $region21
  $region20: #{trend_vae_forward.1} parent=0 // pred_region
    _
  $region21: #{trend_vae_forward.1} parent=0 // pred_fallthru
    _

</llo_original>
